<compile_context>
chip_gen: v7x
topology: tpu7x:2x2x1
jax: 0.10.0
libtpu: 0.0.40
codegen_flags: <defaults>
</compile_context>

<pallas_src>
import re

import jax
import jax.numpy as jnp
from jax.experimental import pallas as pl
from jax.experimental.pallas import tpu as pltpu


def _round_up(x, m):
    return -(-x // m) * m


def _cdiv(a, b):
    return -(-a // b)


def _tpu_generation():
    """Best-effort TPU generation (5, 6, 7, ...); 0 if unknown."""
    try:
        kind = jax.devices()[0].device_kind
    except Exception:
        return 0
    m = re.search(r"(\d+)", kind)
    return int(m.group(1)) if m else 0


def _choose_tiles(B, F, itemsize, gen, max_block_elems=None):
    """Pick (TB, TF, nb, nf, B_pad) so 2 inputs x 2 pipeline buffers fit VMEM."""
    pack = max(8, 32 // itemsize)                  # native sublane packing
    budget = (48 << 20) if gen in (5, 6) else (24 << 20)
    if max_block_elems is None:
        # 2 inputs x 2 pipeline buffers of TB*TF elements each.
        max_block_elems = max(pack * 128, budget // (4 * itemsize))

    F_lanes = _round_up(F, 128)                    # physical lane footprint/row
    B_aligned = _round_up(B, pack)

    if pack * F_lanes <= max_block_elems:
        tf = F                                     # single feature block, full extent
        tb_max = max(pack, (max_block_elems // F_lanes) // pack * pack)
    else:
        tf = max(128, (max_block_elems // pack) // 128 * 128)
        if tf >= F:                                # never exceed the array extent
            tf = F
        tb_max = pack
    nf = _cdiv(F, tf)

    tb_max = min(tb_max, B_aligned)
    if gen >= 7 and B_aligned >= 2 * pack:
        # v7x has 2 TensorCores: keep >= 2 blocks on the parallel batch axis.
        tb_max = min(tb_max, max(pack, (B_aligned // 2) // pack * pack))

    nb = _cdiv(B_aligned, tb_max)                  # number of batch blocks first...
    tb = _round_up(_cdiv(B_aligned, nb), pack)     # ...then TB (caps padding < nb*pack)
    return tb, tf, nb, nf, nb * tb


def _make_l1_kernel(F, TB, TF, compute_dtype):
    """Per-block kernel: masked |pred-label| -> per-lane f32 partial sums."""
    ragged_tail = (F % TF) != 0                    # last feature block reads past F
    n_chunks = TF // 128
    chunked = (TF % 128 == 0) and (n_chunks <= 64)  # pure VPU lane-wise adds

    def kernel(pred_ref, label_ref, out_ref):
        j = pl.program_id(1)

        @pl.when(j == 0)
        def _init():
            out_ref[...] = jnp.zeros_like(out_ref)

        pred = pred_ref[...].astype(compute_dtype)     # (TB, TF)
        label = label_ref[...].astype(compute_dtype)   # (TB, TF)

        valid = label != jnp.asarray(-1, compute_dtype)
        if ragged_tail:
            # Mask lanes past F (garbage from the partial edge block).
            col = jax.lax.broadcasted_iota(jnp.int32, (TB, TF), 1) + j * TF
            valid = jnp.logical_and(valid, col < F)

        diff = jnp.where(valid, jnp.abs(pred - label),
                         jnp.asarray(0, compute_dtype)).astype(jnp.float32)

        if chunked:
            part = diff[:, 0:128]
            for c in range(1, n_chunks):
                part = part + diff[:, c * 128:(c + 1) * 128]
        else:
            # Ragged lane count: one XLU row-reduce, placed in lane 0 so the
            # output store stays full-width.
            lane = jax.lax.broadcasted_iota(jnp.int32, (TB, 128), 1)
            rows = jnp.sum(diff, axis=-1, keepdims=True)       # (TB, 1)
            part = jnp.where(lane == 0, rows, jnp.float32(0))

        out_ref[...] += part.reshape(1, TB, 128)

    return kernel


def _l1_distance_loss_ref(predictions, label_batch, length_batch):
    """Plain-JAX mirror of the PyTorch module (also the tiny-input fast path)."""
    labels_1s = (label_batch != -1).astype(jnp.float32)
    pred_m = predictions.astype(jnp.float32) * labels_1s
    lab_m = label_batch.astype(jnp.float32) * labels_1s
    total_sents = jnp.sum((length_batch != 0).astype(jnp.float32))
    sq_len = length_batch.astype(jnp.float32) ** 2
    loss_per_sent = jnp.sum(jnp.abs(pred_m - lab_m), axis=(1, 2))
    normalized = loss_per_sent / sq_len
    batch_loss = jnp.where(total_sents > 0,
                           jnp.sum(normalized) / total_sents, jnp.float32(0.0))
    return batch_loss, total_sents


def l1_distance_loss(predictions, label_batch, length_batch, *,
                     use_pallas=None, _max_block_elems=None):
    """Returns (batch_loss, total_sents), matching the PyTorch module."""
    B, S1, S2 = predictions.shape
    F = S1 * S2
    itemsize = max(jnp.dtype(predictions.dtype).itemsize,
                   jnp.dtype(label_batch.dtype).itemsize)

    if use_pallas is None:
        # Tiny problems: kernel launch + padding is pure overhead.
        use_pallas = 2 * B * F * itemsize > (1 << 20)
    if not use_pallas:
        return _l1_distance_loss_ref(predictions, label_batch, length_batch)

    gen = _tpu_generation()
    TB, TF, nb, nf, B_pad = _choose_tiles(B, F, itemsize, gen, _max_block_elems)

    # Lane-dense flatten (free reshape); only the cheap batch axis is padded.
    pred2 = predictions.reshape(B, F)
    lab2 = label_batch.reshape(B, F)
    if B_pad > B:
        # Padded rows are zeros (|0-0| = 0) and are sliced off in the epilogue.
        pred2 = jnp.pad(pred2, ((0, B_pad - B), (0, 0)))
        lab2 = jnp.pad(lab2, ((0, B_pad - B), (0, 0)))

    both_bf16 = (predictions.dtype == jnp.bfloat16
                 and label_batch.dtype == jnp.bfloat16)
    compute_dtype = jnp.bfloat16 if (both_bf16 and gen >= 6) else jnp.float32
    vmem_limit = (96 << 20) if gen in (5, 6) else (48 << 20)

    partials = pl.pallas_call(
        _make_l1_kernel(F, TB, TF, compute_dtype),
        out_shape=jax.ShapeDtypeStruct((nb, TB, 128), jnp.float32),
        grid_spec=pltpu.PrefetchScalarGridSpec(
            num_scalar_prefetch=0,
            grid=(nb, nf),
            in_specs=[
                pl.BlockSpec((TB, TF), lambda i, j: (i, j)),
                pl.BlockSpec((TB, TF), lambda i, j: (i, j)),
            ],
            # Lane-dense per-lane partials, resident across the reduction (f)
            # axis only -> the batch axis stays truly parallel.
            out_specs=pl.BlockSpec((1, TB, 128), lambda i, j: (i, 0, 0)),
        ),
        compiler_params=pltpu.CompilerParams(
            dimension_semantics=("parallel", "arbitrary"),
            vmem_limit_bytes=vmem_limit,
        ),
    )(pred2, lab2)

    # O(B) epilogue in plain JAX (exactly the PyTorch semantics).
    loss_per_sent = partials.reshape(nb * TB, 128)[:B].sum(axis=-1)
    length_f = length_batch.astype(jnp.float32)
    total_sents = jnp.sum((length_batch != 0).astype(jnp.float32))
    normalized = loss_per_sent / (length_f * length_f)  # no len==0 guard (as in torch)
    batch_loss = jnp.where(total_sents > 0.0,
                           jnp.sum(normalized) / total_sents, jnp.float32(0.0))
    return batch_loss, total_sents


def _make_case(key, B, S, dtype):
    k1, k2, k3, k4 = jax.random.split(key, 4)
    preds = jax.random.uniform(k1, (B, S, S), dtype=jnp.float32) * 5.0
    labels = jax.random.uniform(k2, (B, S, S), dtype=jnp.float32) * 5.0
    ignore = jax.random.bernoulli(k3, p=0.3, shape=(B, S, S))
    labels = jnp.where(ignore, -1.0, labels)          # entries to ignore
    lengths = jax.random.randint(k4, (B,), minval=1, maxval=S + 1).astype(jnp.int32)
    return preds.astype(dtype), labels.astype(dtype), lengths


if __name__ == "__main__":
    key = jax.random.PRNGKey(0)
    cases = [
        # (B, S, dtype, kwargs, rtol, atol)
        (2, 16, jnp.float32, dict(use_pallas=True), 1e-5, 1e-5),
        # Ragged lane count (S*S=400) + batch padding (3 -> 8 rows).
        (3, 20, jnp.float32, dict(use_pallas=True), 1e-5, 1e-5),
        # Feature axis grid-tiled (nf > 1): exercises accumulation + tail mask.
        (2, 40, jnp.float32, dict(use_pallas=True, _max_block_elems=4096), 1e-5, 1e-5),
        # bf16 inputs (bf16 VALU math on v6e/v7x, f32 elsewhere).
        (4, 24, jnp.bfloat16, dict(use_pallas=True), 3e-2, 3e-2),
        # Tiny-input fast path (plain jnp).
        (2, 16, jnp.float32, dict(), 1e-6, 1e-6),
    ]
    for idx, (B, S, dtype, kwargs, rtol, atol) in enumerate(cases):
        key, sub = jax.random.split(key)
        preds, labels, lengths = _make_case(sub, B, S, dtype)
        loss, sents = l1_distance_loss(preds, labels, lengths, **kwargs)
        jax.block_until_ready((loss, sents))
        ref_loss, ref_sents = _l1_distance_loss_ref(preds, labels, lengths)
        assert jnp.allclose(loss, ref_loss, rtol=rtol, atol=atol), (
            idx, float(loss), float(ref_loss))
        assert jnp.allclose(sents, ref_sents), (idx, float(sents), float(ref_sents))
    print("KERNEL_OK")
</pallas_src>

<mosaic_0001>
module attributes {stable_mosaic.version = 11 : i64} {
  func.func @kernel(%arg0: i32, %arg1: i32, %arg2: memref<8x256xf32, #tpu.memory_space<vmem>>, %arg3: memref<8x256xf32, #tpu.memory_space<vmem>>, %arg4: memref<1x8x128xf32, #tpu.memory_space<vmem>>) attributes {dimension_semantics = [#tpu.dimension_semantics<parallel>, #tpu.dimension_semantics<arbitrary>], iteration_bounds = array<i64: 1, 1>, scalar_prefetch = 0 : i64, scratch_operands = 0 : i64, tpu.core_type = #tpu.core_type<tc>, window_params = [{transform_indices = @transform_0, window_bounds = array<i64: 8, 256>}, {transform_indices = @transform_1, window_bounds = array<i64: 8, 256>}, {transform_indices = @transform_2, window_bounds = array<i64: 1, 8, 128>}]} {
    %c0_i32 = arith.constant 0 : i32
    %0 = arith.cmpi eq, %arg1, %c0_i32 : i32
    %1 = arith.extui %0 : i1 to i32
    %c0_i32_0 = arith.constant 0 : i32
    %2 = arith.cmpi ne, %1, %c0_i32_0 : i32
    scf.if %2 {
      %cst_11 = arith.constant 0.000000e+00 : f32
      %18 = vector.broadcast %cst_11 : f32 to vector<1x8x128xf32>
      %c0_12 = arith.constant 0 : index
      %c0_13 = arith.constant 0 : index
      %c0_14 = arith.constant 0 : index
      %19 = vector.load %arg4[%c0_12, %c0_13, %c0_14] : memref<1x8x128xf32, #tpu.memory_space<vmem>>, vector<1x8x128xf32>
      tpu.vector_store %arg4[%c0_12, %c0_13, %c0_14], %18 {strides = array<i32>} : memref<1x8x128xf32, #tpu.memory_space<vmem>>, vector<1x8x128xf32>,
    } else {
    }
    %c0 = arith.constant 0 : index
    %c0_1 = arith.constant 0 : index
    %3 = vector.load %arg2[%c0, %c0_1] : memref<8x256xf32, #tpu.memory_space<vmem>>, vector<8x256xf32>
    %c0_2 = arith.constant 0 : index
    %c0_3 = arith.constant 0 : index
    %4 = vector.load %arg3[%c0_2, %c0_3] : memref<8x256xf32, #tpu.memory_space<vmem>>, vector<8x256xf32>
    %cst = arith.constant -1.000000e+00 : f32
    %5 = vector.broadcast %cst : f32 to vector<8x256xf32>
    %6 = arith.cmpf one, %4, %5 : vector<8x256xf32>
    %7 = arith.subf %3, %4 : vector<8x256xf32>
    %8 = math.absf %7 : vector<8x256xf32>
    %cst_4 = arith.constant 0.000000e+00 : f32
    %9 = vector.broadcast %cst_4 : f32 to vector<8x256xf32>
    %10 = arith.select %6, %8, %9 : vector<8x256xi1>, vector<8x256xf32>
    %11 = vector.extract_strided_slice %10 {offsets = [0, 0], sizes = [8, 128], strides = [1, 1]} : vector<8x256xf32> to vector<8x128xf32>
    %12 = vector.extract_strided_slice %10 {offsets = [0, 128], sizes = [8, 128], strides = [1, 1]} : vector<8x256xf32> to vector<8x128xf32>
    %13 = arith.addf %11, %12 : vector<8x128xf32>
    %c0_5 = arith.constant 0 : index
    %c0_6 = arith.constant 0 : index
    %c0_7 = arith.constant 0 : index
    %14 = vector.load %arg4[%c0_5, %c0_6, %c0_7] : memref<1x8x128xf32, #tpu.memory_space<vmem>>, vector<1x8x128xf32>
    %15 = vector.shape_cast %13 : vector<8x128xf32> to vector<1x8x128xf32>
    %16 = arith.addf %14, %15 : vector<1x8x128xf32>
    %c0_8 = arith.constant 0 : index
    %c0_9 = arith.constant 0 : index
    %c0_10 = arith.constant 0 : index
    %17 = vector.load %arg4[%c0_8, %c0_9, %c0_10] : memref<1x8x128xf32, #tpu.memory_space<vmem>>, vector<1x8x128xf32>
    tpu.vector_store %arg4[%c0_8, %c0_9, %c0_10], %16 {strides = array<i32>} : memref<1x8x128xf32, #tpu.memory_space<vmem>>, vector<1x8x128xf32>,
    return
  }
  func.func @transform_0(%arg0: i32, %arg1: i32) -> (i32, i32) {
    %c0_i32 = arith.constant 0 : i32
    return %arg0, %arg1 : i32, i32
  }
  func.func @transform_1(%arg0: i32, %arg1: i32) -> (i32, i32) {
    %c0_i32 = arith.constant 0 : i32
    return %arg0, %arg1 : i32, i32
  }
  func.func @transform_2(%arg0: i32, %arg1: i32) -> (i32, i32, i32) {
    %c0_i32 = arith.constant 0 : i32
    %c0_i32_0 = arith.constant 0 : i32
    %c0_i32_1 = arith.constant 0 : i32
    return %arg0, %c0_i32, %c0_i32_0 : i32, i32, i32
  }
}

</mosaic_0001>

<llo_original>
// kernel: tpu_custom_call.1
$region0: #{tpu_custom_call.1}
  #allocation0 [shape = 'u32[]', space=smem, size = 0x4, offset = 0x4, fixed_abs, tag = 'smem constant byte address 0x4 - core index']
  #allocation1 [shape = 'u32[144,128]{1,0:T(1,128)}', space=vmem, size = 0x12000, scoped, tag = 'internal scratch']
  %s0 = inlined_call_operand.hbm [shape: f32[8,256], index: 0, kind: input, shape index: {}]
  %s1 = inlined_call_operand.hbm [shape: f32[8,256], index: 1, kind: input, shape index: {}]
  %s2 = inlined_call_operand.hbm [shape: f32[1,8,128], index: 2, kind: output, shape index: {}]
  %s3 = sld [smem:[#allocation0]]
  $region30: #{tpu_custom_call.1} parent=0
    _
  %s5 = ssub.s32 1, %s3
  %s6 = scalar_select 0, %s5, %s3
  $region1: #{tpu_custom_call.1} parent=0
    #allocation2 [shape = 'u8[8192]{0}', space=vmem, size = 0x2000, scoped, tag = 'input window, operand 0, single buffered']
    #allocation3 [shape = 's32[1]{0}', space=sflag, size = 0x4, scoped, tag = 'scoped memory for tpu_custom_call.1']
    #allocation4 [shape = 's32[1]{0}', space=sflag, size = 0x4, scoped, tag = 'scoped memory for tpu_custom_call.1']
    #allocation5 [shape = 'u8[8192]{0}', space=vmem, size = 0x2000, scoped, tag = 'input window, operand 1, single buffered']
    #allocation6 [shape = 's32[1]{0}', space=sflag, size = 0x4, scoped, tag = 'scoped memory for tpu_custom_call.1']
    #allocation7 [shape = 'u8[4096]{0}', space=vmem, size = 0x1000, scoped, tag = 'output window, operand 0, single buffered']
    %7 = vsyncpa [#allocation3], 0
    %8 = vsyncpa [#allocation6], 0
    %9 = vsyncpa [#allocation4], 0
    // Predicated region
    $region2: #{tpu_custom_call.1} parent=1 // pred_check
      _
    $region3: #{tpu_custom_call.1} parent=1 // pred_check_branch
      %11 = sbr.rel (0) target = $region5
    $region4: #{tpu_custom_call.1} parent=1 // pred_region
      %s13 = ssub.s32 256, 256
      %14 = vsyncadd [#allocation3], %s13
      %s16 = sshll.u32 [#allocation2], 4
      %s17 = int_to_ptr.vmem [resolvable:$true] %s16
      %19 = dma.hbm_to_vmem [thread:$0]  %s0, 256, %s17, [#allocation3]
    $region5: #{tpu_custom_call.1} parent=1 // pred_fallthru
      _
    // Predicated region
    $region6: #{tpu_custom_call.1} parent=1 // pred_check
      _
    $region7: #{tpu_custom_call.1} parent=1 // pred_check_branch
      %21 = sbr.rel (0) target = $region9
    $region8: #{tpu_custom_call.1} parent=1 // pred_region
      %s23 = ssub.s32 256, 256
      %24 = vsyncadd [#allocation6], %s23
      %s26 = sshll.u32 [#allocation5], 4
      %s27 = int_to_ptr.vmem [resolvable:$true] %s26
      %29 = dma.hbm_to_vmem [thread:$0]  %s1, 256, %s27, [#allocation6]
    $region9: #{tpu_custom_call.1} parent=1 // pred_fallthru
      _
    // Predicated region
    $region10: #{tpu_custom_call.1} parent=1 // pred_check
      _
    $region11: #{tpu_custom_call.1} parent=1 // pred_check_branch
      %31 = sbr.rel (0) target = $region13
    $region12: #{tpu_custom_call.1} parent=1 // pred_region
      %32 = dma.done [#allocation3], 256
    $region13: #{tpu_custom_call.1} parent=1 // pred_fallthru
      _
    // Predicated region
    $region14: #{tpu_custom_call.1} parent=1 // pred_check
      _
    $region15: #{tpu_custom_call.1} parent=1 // pred_check_branch
      %34 = sbr.rel (0) target = $region17
    $region16: #{tpu_custom_call.1} parent=1 // pred_region
      %35 = dma.done [#allocation6], 256
    $region17: #{tpu_custom_call.1} parent=1 // pred_fallthru
      _
    %p36 = scmp.eq.s32.totalorder 0, 0
    // Predicated region
    $region18: #{tpu_custom_call.1} parent=1 // pred_check
      %p37 = pneg %p36
    $region19: #{tpu_custom_call.1} parent=1 // pred_check_branch
      %39 = sbr.rel (%p37) target = $region21
    $region20: #{tpu_custom_call.1} parent=1 // pred_region
      %40 = vst [vmem:[#allocation7] sm:$0xff] 0.0
    $region21: #{tpu_custom_call.1} parent=1 // pred_fallthru
      _
    %v41 = vld [vmem:[#allocation2] sm:$0xff]
    %v42 = vld [vmem:[#allocation2 + $0x8] sm:$0xff]
    %v43 = vld [vmem:[#allocation5] sm:$0xff]
    %v44 = vld [vmem:[#allocation5 + $0x8] sm:$0xff]
    %vm45 = vcmp.ne.f32.partialorder %v43, -1.0
    %vm46 = vcmp.ne.f32.partialorder %v44, -1.0
    %v47 = vsub.f32 %v41, %v43
    %v48 = vsub.f32 %v42, %v44
    %v49 = vand.u32 2147483647, %v47
    %v50 = vand.u32 2147483647, %v48
    %v51 = vsel %vm45, %v49, 0.0
    %v52 = vsel %vm46, %v50, 0.0
    %v53 = vadd.f32 %v51, %v52
    %v54 = vld [vmem:[#allocation7] sm:$0xff]
    %v55 = vadd.f32 %v54, %v53
    %56 = vst [vmem:[#allocation7] sm:$0xff] %v55
    // Predicated region
    $region22: #{tpu_custom_call.1} parent=1 // pred_check
      _
    $region23: #{tpu_custom_call.1} parent=1 // pred_check_branch
      %58 = sbr.rel (0) target = $region25
    $region24: #{tpu_custom_call.1} parent=1 // pred_region
      %s60 = ssub.s32 128, 128
      %61 = vsyncadd [#allocation4], %s60
      %s63 = sshll.u32 [#allocation7], 4
      %s64 = int_to_ptr.vmem [resolvable:$true] %s63
      %66 = dma.vmem_to_hbm [thread:$0]  %s64, 128, %s2, [#allocation4]
    $region25: #{tpu_custom_call.1} parent=1 // pred_fallthru
      _
    // Predicated region
    $region26: #{tpu_custom_call.1} parent=1 // pred_check
      _
    $region27: #{tpu_custom_call.1} parent=1 // pred_check_branch
      %68 = sbr.rel (0) target = $region29
    $region28: #{tpu_custom_call.1} parent=1 // pred_region
      %69 = dma.done [#allocation4], 128
    $region29: #{tpu_custom_call.1} parent=1 // pred_fallthru
      _
    %70 = vsyncpa [#allocation3], 1
    %71 = vsyncpa [#allocation6], 1
    %72 = vsyncpa [#allocation4], 1

</llo_original>
